<compile_context>
chip_gen: v6e
topology: v6e:2x2x1
jax: 0.10.0
libtpu: 0.0.40
codegen_flags: <defaults>
</compile_context>

<pallas_src>
import functools

import numpy as np

import jax
import jax.numpy as jnp
from jax.experimental import pallas as pl
from jax.experimental.pallas import tpu as pltpu


# ----------------------------------------------------------------------------
# Param preparation: conv weights -> single matmul matrix (pool-quadrant major)
# ----------------------------------------------------------------------------
def build_conv_pool_matrix(w_conv, b_conv, H, W):
    """Expand 3x3 'same' conv weights into (H*W*Cin, 4*H2*W2*Cout).

    Column order is (dh, dw, h2, w2, cout): the four 2x2-pool candidates are
    four contiguous 64-lane column chunks; within a chunk the order matches the
    channels-last flatten (h2, w2, cout) that feeds fc1.  Zero padding of the
    conv is folded in (out-of-range taps get zero weights).
    """
    w = np.asarray(w_conv, dtype=np.float32)            # (KH, KW, Cin, Cout)
    KH, KW, C_IN, C_OUT = w.shape
    H2, W2 = H // 2, W // 2
    y, x, dh, dw, h2, w2 = np.meshgrid(
        np.arange(H), np.arange(W), np.arange(2), np.arange(2),
        np.arange(H2), np.arange(W2), indexing="ij")
    kh = y - (2 * h2 + dh) + (KH // 2)
    kw = x - (2 * w2 + dw) + (KW // 2)
    valid = (kh >= 0) & (kh < KH) & (kw >= 0) & (kw < KW)
    taps = w[np.clip(kh, 0, KH - 1), np.clip(kw, 0, KW - 1)]   # (...,Cin,Cout)
    taps = np.where(valid[..., None, None], taps, 0.0)
    taps = taps.transpose(0, 1, 6, 2, 3, 4, 5, 7)      # (y,x,ci, dh,dw,h2,w2,co)
    mat = taps.reshape(H * W * C_IN, 4 * H2 * W2 * C_OUT)
    b_tiled = np.tile(np.asarray(b_conv, np.float32).reshape(1, C_OUT),
                      (1, H2 * W2))                    # (1, H2*W2*Cout), c fastest
    return mat, b_tiled


def prepare_params(params, H, W):
    """One-time weight transform to the kernel's layout / dtypes."""
    w_mat, b_pool = build_conv_pool_matrix(params["w_conv"], params["b_conv"],
                                           H, W)
    w1 = np.asarray(params["w1"], np.float32)           # (H2*W2*Cout, 16)
    w2 = np.asarray(params["w2"], np.float32)           # (16 + 4, OUT)
    b1 = np.asarray(params["b1"], np.float32).reshape(1, -1)
    b2 = np.asarray(params["b2"], np.float32).reshape(1, -1)
    hidden = w1.shape[1]
    n_out = w2.shape[1]
    out_pad = max(128, -(-n_out // 128) * 128)           # lane-dense output slab

    w2_h = np.zeros((hidden, out_pad), np.float32)
    w2_h[:, :n_out] = w2[:hidden]
    # fc2 over [vitesse | goal | 1]: bias folded into the last row.
    w2_vgb = np.zeros((w2.shape[0] - hidden + 1, out_pad), np.float32)
    w2_vgb[:-1, :n_out] = w2[hidden:]
    w2_vgb[-1, :n_out] = b2[0]

    return dict(
        w_conv_mat=jnp.asarray(w_mat, jnp.bfloat16),     # (H*W*Cin, 4*H2*W2*Cout)
        w1=jnp.asarray(w1, jnp.bfloat16),                # (H2*W2*Cout, 16)
        w2_h=jnp.asarray(w2_h, jnp.bfloat16),            # (16, OUT_PAD)
        w2_vgb=jnp.asarray(w2_vgb, jnp.bfloat16),        # (5, OUT_PAD)
        b_pool=jnp.asarray(b_pool, jnp.float32),         # (1, H2*W2*Cout)
        b1=jnp.asarray(b1, jnp.float32),                 # (1, 16)
    )


# ----------------------------------------------------------------------------
# Fused kernel: conv(as matmul) + maxpool + relu + fc1 + relu + fc2
# ----------------------------------------------------------------------------
def _dqn_fused_kernel(x_ref, vg_ref, wc_ref, w1_ref, w2h_ref, w2vg_ref,
                      bpool_ref, b1_ref, o_ref, *, pool_cols):
    # Cast the dominant input stream in-kernel (hides under the conv matmul);
    # all matmuls are bf16 on the MXU with f32 accumulation.
    xb = x_ref[...].astype(jnp.bfloat16)
    conv = jnp.dot(xb, wc_ref[...], preferred_element_type=jnp.float32)

    # maxpool(2,2): quadrant chunks are contiguous 64-lane column groups.
    # Pair 0<->2 and 1<->3 first: those chunks sit at the same lane offsets of
    # adjacent 128-lane groups, so the first-level maxes are pure VPU; only the
    # final max needs a lane rotate.  (max is associative -> exact.)
    c0 = conv[:, 0 * pool_cols:1 * pool_cols]
    c1 = conv[:, 1 * pool_cols:2 * pool_cols]
    c2 = conv[:, 2 * pool_cols:3 * pool_cols]
    c3 = conv[:, 3 * pool_cols:4 * pool_cols]
    m = jnp.maximum(jnp.maximum(c0, c2), jnp.maximum(c1, c3))

    # per-channel conv bias commutes with the max; ReLU-after-flatten == here.
    feat = jnp.maximum(m + bpool_ref[...], 0.0)                  # (tile_n, 64) f32

    # fc1 + ReLU
    h = jnp.dot(feat.astype(jnp.bfloat16), w1_ref[...],
                preferred_element_type=jnp.float32)
    h = jnp.maximum(h + b1_ref[...], 0.0)                        # (tile_n, 16) f32

    # fc2 over concat(h, vitesse, goal) + bias: two pre-split matmuls, bias is
    # the last row of w2_vgb (multiplied by the constant-1 column of vg).
    out = jnp.dot(h.astype(jnp.bfloat16), w2h_ref[...],
                  preferred_element_type=jnp.float32)
    out = out + jnp.dot(vg_ref[...].astype(jnp.bfloat16), w2vg_ref[...],
                        preferred_element_type=jnp.float32)
    o_ref[...] = out                                             # lane-dense slab


# ----------------------------------------------------------------------------
# Wrapper
# ----------------------------------------------------------------------------
def _pick_tile_n(n, tile_n_max):
    """Batch tile: big tiles to amortize per-grid-step overhead, but >=2 grid
    steps for mid-size batches so the parallel axis shards across both
    TensorCores on v7x."""
    if n <= tile_n_max:
        if n >= 512:
            half = -(-n // 2)
            return min(tile_n_max, ((half + 7) // 8) * 8)
        return n                         # single block == full dim (any size)
    return tile_n_max                    # multiple of 8 by construction


@functools.partial(jax.jit, static_argnames=("output_features", "tile_n_max"))
def dqn_forward(kparams, x, vitesse, goal, output_features, tile_n_max=1024):
    N, H, W, C_IN = x.shape
    assert H % 2 == 0 and W % 2 == 0

    wc = kparams["w_conv_mat"]                  # (H*W*Cin, 4*H2*W2*Cout) bf16
    w1 = kparams["w1"]                          # (H2*W2*Cout, 16) bf16
    w2h = kparams["w2_h"]                       # (16, OUT_PAD) bf16
    w2vg = kparams["w2_vgb"]                    # (5, OUT_PAD) bf16
    b_pool = kparams["b_pool"]                  # (1, H2*W2*Cout) f32
    b1 = kparams["b1"]                          # (1, 16) f32
    k_in, four_pc = wc.shape
    pool_cols = four_pc // 4
    out_pad = w2h.shape[1]

    # x is fed at its storage dtype (uint8 / bf16 / f32); cast happens in-kernel.
    x_flat = x.reshape(N, H * W * C_IN)
    vg1 = jnp.concatenate(
        [vitesse.reshape(N, 1).astype(jnp.float32),
         goal.reshape(N, 3).astype(jnp.float32),
         jnp.ones((N, 1), jnp.float32)], axis=1)                 # (N, 5)

    tile_n = _pick_tile_n(N, tile_n_max)
    grid = (pl.cdiv(N, tile_n),)

    kernel = functools.partial(_dqn_fused_kernel, pool_cols=pool_cols)
    out = pl.pallas_call(
        kernel,
        out_shape=jax.ShapeDtypeStruct((N, out_pad), jnp.float32),
        grid=grid,
        in_specs=[
            pl.BlockSpec((tile_n, k_in), lambda i: (i, 0)),       # x_flat
            pl.BlockSpec((tile_n, 5), lambda i: (i, 0)),          # [vit|goal|1]
            pl.BlockSpec(wc.shape, lambda i: (0, 0)),             # conv matrix
            pl.BlockSpec(w1.shape, lambda i: (0, 0)),             # fc1 W
            pl.BlockSpec(w2h.shape, lambda i: (0, 0)),            # fc2 W (h part)
            pl.BlockSpec(w2vg.shape, lambda i: (0, 0)),           # fc2 W (vg+b)
            pl.BlockSpec(b_pool.shape, lambda i: (0, 0)),         # conv bias
            pl.BlockSpec(b1.shape, lambda i: (0, 0)),             # fc1 bias
        ],
        out_specs=pl.BlockSpec((tile_n, out_pad), lambda i: (i, 0)),
        compiler_params=pltpu.CompilerParams(
            dimension_semantics=("parallel",)),
    )(x_flat, vg1, wc, w1, w2h, w2vg, b_pool, b1)
    return out[:, :output_features]


# ----------------------------------------------------------------------------
# Deterministic synthetic parameters (shapes from DQN.__init__)
# ----------------------------------------------------------------------------
def init_params(key, input_samples, output_features, c_in=3, c_out=4):
    ks = jax.random.split(key, 6)

    def unif(k, shape, fan_in):
        bound = 1.0 / np.sqrt(fan_in)
        return jax.random.uniform(k, shape, jnp.float32, -bound, bound)

    return dict(
        w_conv=unif(ks[0], (3, 3, c_in, c_out), c_in * 9),   # Conv2d(3,4,3,pad=1)
        b_conv=unif(ks[1], (1, c_out), c_in * 9),
        w1=unif(ks[2], (input_samples, 16), input_samples),  # Linear(in,16)
        b1=unif(ks[3], (1, 16), input_samples),
        w2=unif(ks[4], (16 + 4, output_features), 20),       # Linear(20,out)
        b2=unif(ks[5], (1, output_features), 20),
    )


# Pure-JAX f32 reference for sanity checking the kernel.
def dqn_reference(params, x, vitesse, goal):
    conv = jax.lax.conv_general_dilated(
        x.astype(jnp.float32), params["w_conv"],
        window_strides=(1, 1), padding="SAME",
        dimension_numbers=("NHWC", "HWIO", "NHWC"))
    conv = conv + params["b_conv"][0]
    pooled = jax.lax.reduce_window(conv, -jnp.inf, jax.lax.max,
                                   (1, 2, 2, 1), (1, 2, 2, 1), "VALID")
    feat = jnp.maximum(pooled.reshape(x.shape[0], -1), 0.0)
    h = jnp.maximum(feat @ params["w1"] + params["b1"], 0.0)
    cat = jnp.concatenate(
        [h, vitesse.reshape(-1, 1), goal.reshape(-1, 3)], axis=1)
    return cat @ params["w2"] + params["b2"]


if __name__ == "__main__":
    N, H, W, C_IN, C_OUT = 2, 8, 8, 3, 4
    OUTPUT_FEATURES = 4
    INPUT_SAMPLES = C_OUT * (H // 2) * (W // 2)   # fc1 fan-in == flattened size

    key = jax.random.PRNGKey(0)
    k_params, k_x, k_v, k_g = jax.random.split(key, 4)
    params = init_params(k_params, INPUT_SAMPLES, OUTPUT_FEATURES, C_IN, C_OUT)
    kparams = prepare_params(params, H, W)        # one-time weight transform

    x = jax.random.uniform(k_x, (N, H, W, C_IN), jnp.float32)   # channels-last
    vitesse = jax.random.uniform(k_v, (N,), jnp.float32)
    goal = jax.random.uniform(k_g, (N, 3), jnp.float32)

    out = dqn_forward(kparams, x, vitesse, goal,
                      output_features=OUTPUT_FEATURES)
    out = jax.block_until_ready(out)
    ref = dqn_reference(params, x, vitesse, goal)
    np.testing.assert_allclose(np.asarray(out), np.asarray(ref),
                               rtol=2e-2, atol=2e-2)   # bf16 MXU, f32 accum
    assert out.shape == (N, OUTPUT_FEATURES)

    # Second small check exercising the multi-block grid + partial last block.
    N2 = 20
    x2 = jax.random.uniform(jax.random.fold_in(k_x, 1), (N2, H, W, C_IN))
    v2 = jax.random.uniform(jax.random.fold_in(k_v, 1), (N2,))
    g2 = jax.random.uniform(jax.random.fold_in(k_g, 1), (N2, 3))
    out2 = jax.block_until_ready(
        dqn_forward(kparams, x2, v2, g2,
                    output_features=OUTPUT_FEATURES, tile_n_max=8))
    ref2 = dqn_reference(params, x2, v2, g2)
    np.testing.assert_allclose(np.asarray(out2), np.asarray(ref2),
                               rtol=2e-2, atol=2e-2)

    print("KERNEL_OK")
</pallas_src>

<mosaic_0001>
module attributes {stable_mosaic.version = 11 : i64} {
  func.func @_dqn_fused_kernel(%arg0: i32, %arg1: memref<2x192xf32, #tpu.memory_space<vmem>>, %arg2: memref<2x5xf32, #tpu.memory_space<vmem>>, %arg3: memref<192x256xbf16, #tpu.memory_space<vmem>>, %arg4: memref<64x16xbf16, #tpu.memory_space<vmem>>, %arg5: memref<16x128xbf16, #tpu.memory_space<vmem>>, %arg6: memref<5x128xbf16, #tpu.memory_space<vmem>>, %arg7: memref<1x64xf32, #tpu.memory_space<vmem>>, %arg8: memref<1x16xf32, #tpu.memory_space<vmem>>, %arg9: memref<2x128xf32, #tpu.memory_space<vmem>>) attributes {dimension_semantics = [#tpu.dimension_semantics<parallel>], iteration_bounds = array<i64: 1>, scalar_prefetch = 0 : i64, scratch_operands = 0 : i64, tpu.core_type = #tpu.core_type<tc>, window_params = [{transform_indices = @transform_0, window_bounds = array<i64: 2, 192>}, {transform_indices = @transform_1, window_bounds = array<i64: 2, 5>}, {pipeline_mode = #tpu.pipeline_mode<synchronous>, transform_indices = @transform_2, window_bounds = array<i64: 192, 256>}, {pipeline_mode = #tpu.pipeline_mode<synchronous>, transform_indices = @transform_3, window_bounds = array<i64: 64, 16>}, {pipeline_mode = #tpu.pipeline_mode<synchronous>, transform_indices = @transform_4, window_bounds = array<i64: 16, 128>}, {pipeline_mode = #tpu.pipeline_mode<synchronous>, transform_indices = @transform_5, window_bounds = array<i64: 5, 128>}, {pipeline_mode = #tpu.pipeline_mode<synchronous>, transform_indices = @transform_6, window_bounds = array<i64: 1, 64>}, {pipeline_mode = #tpu.pipeline_mode<synchronous>, transform_indices = @transform_7, window_bounds = array<i64: 1, 16>}, {transform_indices = @transform_8, window_bounds = array<i64: 2, 128>}]} {
    %c0 = arith.constant 0 : index
    %c0_0 = arith.constant 0 : index
    %0 = vector.load %arg1[%c0, %c0_0] : memref<2x192xf32, #tpu.memory_space<vmem>>, vector<2x192xf32>
    %1 = arith.truncf %0 : vector<2x192xf32> to vector<2x192xbf16>
    %c0_1 = arith.constant 0 : index
    %c0_2 = arith.constant 0 : index
    %2 = vector.load %arg3[%c0_1, %c0_2] : memref<192x256xbf16, #tpu.memory_space<vmem>>, vector<192x256xbf16>
    %cst = arith.constant dense<0.000000e+00> : vector<2x256xf32>
    %3 = tpu.matmul %1, %2, %cst {dimension_numbers = #tpu.dot_dimension_numbers<[1], [0], [0], [1], [0, 0, 1, 1], [], []>} : vector<2x192xbf16>, vector<192x256xbf16>, vector<2x256xf32> -> vector<2x256xf32>
    %4 = vector.extract_strided_slice %3 {offsets = [0, 0], sizes = [2, 64], strides = [1, 1]} : vector<2x256xf32> to vector<2x64xf32>
    %5 = vector.extract_strided_slice %3 {offsets = [0, 64], sizes = [2, 64], strides = [1, 1]} : vector<2x256xf32> to vector<2x64xf32>
    %6 = vector.extract_strided_slice %3 {offsets = [0, 128], sizes = [2, 64], strides = [1, 1]} : vector<2x256xf32> to vector<2x64xf32>
    %7 = vector.extract_strided_slice %3 {offsets = [0, 192], sizes = [2, 64], strides = [1, 1]} : vector<2x256xf32> to vector<2x64xf32>
    %8 = arith.maximumf %4, %6 : vector<2x64xf32>
    %9 = arith.maximumf %5, %7 : vector<2x64xf32>
    %10 = arith.maximumf %8, %9 : vector<2x64xf32>
    %c0_3 = arith.constant 0 : index
    %c0_4 = arith.constant 0 : index
    %11 = vector.load %arg7[%c0_3, %c0_4] : memref<1x64xf32, #tpu.memory_space<vmem>>, vector<1x64xf32>
    %12 = vector.broadcast %11 : vector<1x64xf32> to vector<2x64xf32>
    %13 = arith.addf %10, %12 : vector<2x64xf32>
    %cst_5 = arith.constant 0.000000e+00 : f32
    %14 = vector.broadcast %cst_5 : f32 to vector<2x64xf32>
    %15 = arith.maximumf %13, %14 : vector<2x64xf32>
    %16 = arith.truncf %15 : vector<2x64xf32> to vector<2x64xbf16>
    %c0_6 = arith.constant 0 : index
    %c0_7 = arith.constant 0 : index
    %17 = vector.load %arg4[%c0_6, %c0_7] : memref<64x16xbf16, #tpu.memory_space<vmem>>, vector<64x16xbf16>
    %cst_8 = arith.constant dense<0.000000e+00> : vector<2x16xf32>
    %18 = tpu.matmul %16, %17, %cst_8 {dimension_numbers = #tpu.dot_dimension_numbers<[1], [0], [0], [1], [0, 0, 1, 1], [], []>} : vector<2x64xbf16>, vector<64x16xbf16>, vector<2x16xf32> -> vector<2x16xf32>
    %c0_9 = arith.constant 0 : index
    %c0_10 = arith.constant 0 : index
    %19 = vector.load %arg8[%c0_9, %c0_10] : memref<1x16xf32, #tpu.memory_space<vmem>>, vector<1x16xf32>
    %20 = vector.broadcast %19 : vector<1x16xf32> to vector<2x16xf32>
    %21 = arith.addf %18, %20 : vector<2x16xf32>
    %cst_11 = arith.constant 0.000000e+00 : f32
    %22 = vector.broadcast %cst_11 : f32 to vector<2x16xf32>
    %23 = arith.maximumf %21, %22 : vector<2x16xf32>
    %24 = arith.truncf %23 : vector<2x16xf32> to vector<2x16xbf16>
    %c0_12 = arith.constant 0 : index
    %c0_13 = arith.constant 0 : index
    %25 = vector.load %arg5[%c0_12, %c0_13] : memref<16x128xbf16, #tpu.memory_space<vmem>>, vector<16x128xbf16>
    %cst_14 = arith.constant dense<0.000000e+00> : vector<2x128xf32>
    %26 = tpu.matmul %24, %25, %cst_14 {dimension_numbers = #tpu.dot_dimension_numbers<[1], [0], [0], [1], [0, 0, 1, 1], [], []>} : vector<2x16xbf16>, vector<16x128xbf16>, vector<2x128xf32> -> vector<2x128xf32>
    %c0_15 = arith.constant 0 : index
    %c0_16 = arith.constant 0 : index
    %27 = vector.load %arg2[%c0_15, %c0_16] : memref<2x5xf32, #tpu.memory_space<vmem>>, vector<2x5xf32>
    %28 = arith.truncf %27 : vector<2x5xf32> to vector<2x5xbf16>
    %c0_17 = arith.constant 0 : index
    %c0_18 = arith.constant 0 : index
    %29 = vector.load %arg6[%c0_17, %c0_18] : memref<5x128xbf16, #tpu.memory_space<vmem>>, vector<5x128xbf16>
    %cst_19 = arith.constant dense<0.000000e+00> : vector<2x128xf32>
    %30 = tpu.matmul %28, %29, %cst_19 {dimension_numbers = #tpu.dot_dimension_numbers<[1], [0], [0], [1], [0, 0, 1, 1], [], []>} : vector<2x5xbf16>, vector<5x128xbf16>, vector<2x128xf32> -> vector<2x128xf32>
    %31 = arith.addf %26, %30 : vector<2x128xf32>
    %c0_20 = arith.constant 0 : index
    %c0_21 = arith.constant 0 : index
    %32 = vector.load %arg9[%c0_20, %c0_21] : memref<2x128xf32, #tpu.memory_space<vmem>>, vector<2x128xf32>
    tpu.vector_store %arg9[%c0_20, %c0_21], %31 {strides = array<i32>} : memref<2x128xf32, #tpu.memory_space<vmem>>, vector<2x128xf32>,
    return
  }
  func.func @transform_0(%arg0: i32) -> (i32, i32) {
    %c0_i32 = arith.constant 0 : i32
    %c0_i32_0 = arith.constant 0 : i32
    return %arg0, %c0_i32 : i32, i32
  }
  func.func @transform_1(%arg0: i32) -> (i32, i32) {
    %c0_i32 = arith.constant 0 : i32
    %c0_i32_0 = arith.constant 0 : i32
    return %arg0, %c0_i32 : i32, i32
  }
  func.func @transform_2(%arg0: i32) -> (i32, i32) {
    %c0_i32 = arith.constant 0 : i32
    %c0_i32_0 = arith.constant 0 : i32
    %c0_i32_1 = arith.constant 0 : i32
    return %c0_i32, %c0_i32_0 : i32, i32
  }
  func.func @transform_3(%arg0: i32) -> (i32, i32) {
    %c0_i32 = arith.constant 0 : i32
    %c0_i32_0 = arith.constant 0 : i32
    %c0_i32_1 = arith.constant 0 : i32
    return %c0_i32, %c0_i32_0 : i32, i32
  }
  func.func @transform_4(%arg0: i32) -> (i32, i32) {
    %c0_i32 = arith.constant 0 : i32
    %c0_i32_0 = arith.constant 0 : i32
    %c0_i32_1 = arith.constant 0 : i32
    return %c0_i32, %c0_i32_0 : i32, i32
  }
  func.func @transform_5(%arg0: i32) -> (i32, i32) {
    %c0_i32 = arith.constant 0 : i32
    %c0_i32_0 = arith.constant 0 : i32
    %c0_i32_1 = arith.constant 0 : i32
    return %c0_i32, %c0_i32_0 : i32, i32
  }
  func.func @transform_6(%arg0: i32) -> (i32, i32) {
    %c0_i32 = arith.constant 0 : i32
    %c0_i32_0 = arith.constant 0 : i32
    %c0_i32_1 = arith.constant 0 : i32
    return %c0_i32, %c0_i32_0 : i32, i32
  }
  func.func @transform_7(%arg0: i32) -> (i32, i32) {
    %c0_i32 = arith.constant 0 : i32
    %c0_i32_0 = arith.constant 0 : i32
    %c0_i32_1 = arith.constant 0 : i32
    return %c0_i32, %c0_i32_0 : i32, i32
  }
  func.func @transform_8(%arg0: i32) -> (i32, i32) {
    %c0_i32 = arith.constant 0 : i32
    %c0_i32_0 = arith.constant 0 : i32
    return %arg0, %c0_i32 : i32, i32
  }
}

</mosaic_0001>

<llo_original>
// kernel: dqn_forward.1
$region0: #{dqn_forward.1}
  #allocation0 [shape = 'u32[]', space=smem, size = 0x4, offset = 0x4, fixed_abs, tag = 'smem constant byte address 0x4 - core index']
  #allocation1 [shape = 'u32[144,128]{1,0:T(1,128)}', space=vmem, size = 0x12000, scoped, tag = 'internal scratch']
  %s0 = inlined_call_operand.vmem [shape: f32[2,192], index: 0, kind: input, shape index: {}]
  %s1 = inlined_call_operand.vmem [shape: f32[2,5], index: 1, kind: input, shape index: {}]
  %s2 = inlined_call_operand.vmem [shape: bf16[192,256], index: 2, kind: input, shape index: {}]
  %s3 = inlined_call_operand.vmem [shape: bf16[64,16], index: 3, kind: input, shape index: {}]
  %s4 = inlined_call_operand.vmem [shape: bf16[16,128], index: 4, kind: input, shape index: {}]
  %s5 = inlined_call_operand.vmem [shape: bf16[5,128], index: 5, kind: input, shape index: {}]
  %s6 = inlined_call_operand.vmem [shape: f32[1,64], index: 6, kind: input, shape index: {}]
  %s7 = inlined_call_operand.vmem [shape: f32[1,16], index: 7, kind: input, shape index: {}]
  %s8 = inlined_call_operand.hbm [shape: f32[2,128], index: 8, kind: output, shape index: {}]
  %s9 = sld [smem:[#allocation0]]
  $region42: #{dqn_forward.1} parent=0
    _
  %s11 = ssub.s32 1, %s9
  %s12 = scalar_select 0, %s11, %s9
  $region1: #{dqn_forward.1} parent=0
    #allocation2 [shape = 'u8[1024]{0}', space=vmem, size = 0x400, scoped, tag = 'output window, operand 0, single buffered']
    #allocation3 [shape = 's32[1]{0}', space=sflag, size = 0x4, scoped, tag = 'scoped memory for dqn_forward.1']
    %13 = vsyncpa [#allocation3], 0
    // Predicated region
    $region2: #{dqn_forward.1} parent=1 // pred_check
      _
    $region3: #{dqn_forward.1} parent=1 // pred_check_branch
      %15 = sbr.rel (0) target = $region5
    $region4: #{dqn_forward.1} parent=1 // pred_region
      _
    $region5: #{dqn_forward.1} parent=1 // pred_fallthru
      _
    // Predicated region
    $region6: #{dqn_forward.1} parent=1 // pred_check
      _
    $region7: #{dqn_forward.1} parent=1 // pred_check_branch
      %17 = sbr.rel (0) target = $region9
    $region8: #{dqn_forward.1} parent=1 // pred_region
      _
    $region9: #{dqn_forward.1} parent=1 // pred_fallthru
      _
    // Predicated region
    $region10: #{dqn_forward.1} parent=1 // pred_check
      _
    $region11: #{dqn_forward.1} parent=1 // pred_check_branch
      %19 = sbr.rel (0) target = $region13
    $region12: #{dqn_forward.1} parent=1 // pred_region
      _
    $region13: #{dqn_forward.1} parent=1 // pred_fallthru
      _
    // Predicated region
    $region14: #{dqn_forward.1} parent=1 // pred_check
      _
    $region15: #{dqn_forward.1} parent=1 // pred_check_branch
      %21 = sbr.rel (0) target = $region17
    $region16: #{dqn_forward.1} parent=1 // pred_region
      _
    $region17: #{dqn_forward.1} parent=1 // pred_fallthru
      _
    // Predicated region
    $region18: #{dqn_forward.1} parent=1 // pred_check
      _
    $region19: #{dqn_forward.1} parent=1 // pred_check_branch
      %23 = sbr.rel (0) target = $region21
    $region20: #{dqn_forward.1} parent=1 // pred_region
      _
    $region21: #{dqn_forward.1} parent=1 // pred_fallthru
      _
    // Predicated region
    $region22: #{dqn_forward.1} parent=1 // pred_check
      _
    $region23: #{dqn_forward.1} parent=1 // pred_check_branch
      %25 = sbr.rel (0) target = $region25
    $region24: #{dqn_forward.1} parent=1 // pred_region
      _
    $region25: #{dqn_forward.1} parent=1 // pred_fallthru
      _
    // Predicated region
    $region26: #{dqn_forward.1} parent=1 // pred_check
      _
    $region27: #{dqn_forward.1} parent=1 // pred_check_branch
      %27 = sbr.rel (0) target = $region29
    $region28: #{dqn_forward.1} parent=1 // pred_region
      _
    $region29: #{dqn_forward.1} parent=1 // pred_fallthru
      _
    // Predicated region
    $region30: #{dqn_forward.1} parent=1 // pred_check
      _
    $region31: #{dqn_forward.1} parent=1 // pred_check_branch
      %29 = sbr.rel (0) target = $region33
    $region32: #{dqn_forward.1} parent=1 // pred_region
      _
    $region33: #{dqn_forward.1} parent=1 // pred_fallthru
      _
    %v31 = vld [vmem:[%s0] sm:$0xf]
    %v34 = vunpack.c.l.s4 1983009808
    %v35 = vunpack.c.0.s8 %v34
    %v36 = vlaneseq
    %v37 = vshrl.u32 %v36, 7
    %v38 = vsub.s32 %v35, %v37
    %v39 = vrot.slane %v31, %v38
    %v40 = vcombine.high %v39, %v39
    %v43 = vpack.c.bf16 %v39, %v39
    %v44 = vpack.c.bf16 %v40, %v40
    %v45 = vld [vmem:[%s2] sm:$0xff]
    %v46 = vld [vmem:[%s2 + $0x8] sm:$0xff]
    %v47 = vld [vmem:[%s2 + $0x10] sm:$0xff]
    %v48 = vld [vmem:[%s2 + $0x18] sm:$0xff]
    %v49 = vld [vmem:[%s2 + $0x20] sm:$0xff]
    %v50 = vld [vmem:[%s2 + $0x28] sm:$0xff]
    %v51 = vld [vmem:[%s2 + $0x30] sm:$0xff]
    %v52 = vld [vmem:[%s2 + $0x38] sm:$0xff]
    %v53 = vld [vmem:[%s2 + $0x40] sm:$0xff]
    %v54 = vld [vmem:[%s2 + $0x48] sm:$0xff]
    %v55 = vld [vmem:[%s2 + $0x50] sm:$0xff]
    %v56 = vld [vmem:[%s2 + $0x58] sm:$0xff]
    %v57 = vld [vmem:[%s2 + $0x60] sm:$0xff]
    %v58 = vld [vmem:[%s2 + $0x68] sm:$0xff]
    %v59 = vld [vmem:[%s2 + $0x70] sm:$0xff]
    %v60 = vld [vmem:[%s2 + $0x78] sm:$0xff]
    %v61 = vld [vmem:[%s2 + $0x80] sm:$0xff]
    %v62 = vld [vmem:[%s2 + $0x88] sm:$0xff]
    %v63 = vld [vmem:[%s2 + $0x90] sm:$0xff]
    %v64 = vld [vmem:[%s2 + $0x98] sm:$0xff]
    %v65 = vld [vmem:[%s2 + $0xa0] sm:$0xff]
    %v66 = vld [vmem:[%s2 + $0xa8] sm:$0xff]
    %v67 = vld [vmem:[%s2 + $0xb0] sm:$0xff]
    %v68 = vld [vmem:[%s2 + $0xb8] sm:$0xff]
    %v93 = vunpack.c.l.b16 %v45
    %v94 = vunpack.c.h.b16 %v45
    %v95 = vunpack.c.l.b16 %v46
    %v96 = vunpack.c.h.b16 %v46
    %v97 = vunpack.c.l.b16 %v47
    %v98 = vunpack.c.h.b16 %v47
    %v99 = vunpack.c.l.b16 %v48
    %v100 = vunpack.c.h.b16 %v48
    %v101 = vunpack.c.l.b16 %v49
    %v102 = vunpack.c.h.b16 %v49
    %v103 = vunpack.c.l.b16 %v50
    %v104 = vunpack.c.h.b16 %v50
    %v105 = vunpack.c.l.b16 %v51
    %v106 = vunpack.c.h.b16 %v51
    %v107 = vunpack.c.l.b16 %v52
    %v108 = vunpack.c.h.b16 %v52
    %v109 = vunpack.c.l.b16 %v53
    %v110 = vunpack.c.h.b16 %v53
    %v111 = vunpack.c.l.b16 %v54
    %v112 = vunpack.c.h.b16 %v54
    %v113 = vunpack.c.l.b16 %v55
    %v114 = vunpack.c.h.b16 %v55
    %v115 = vunpack.c.l.b16 %v56
    %v116 = vunpack.c.h.b16 %v56
    %v117 = vunpack.c.l.b16 %v57
    %v118 = vunpack.c.h.b16 %v57
    %v119 = vunpack.c.l.b16 %v58
    %v120 = vunpack.c.h.b16 %v58
    %v121 = vunpack.c.l.b16 %v59
    %v122 = vunpack.c.h.b16 %v59
    %v123 = vunpack.c.l.b16 %v60
    %v124 = vunpack.c.h.b16 %v60
    %v125 = vunpack.c.l.b16 %v61
    %v126 = vunpack.c.h.b16 %v61
    %v127 = vunpack.c.l.b16 %v62
    %v128 = vunpack.c.h.b16 %v62
    %v129 = vunpack.c.l.b16 %v63
    %v130 = vunpack.c.h.b16 %v63
    %v131 = vunpack.c.l.b16 %v64
    %v132 = vunpack.c.h.b16 %v64
    %v133 = vunpack.c.l.b16 %v65
    %v134 = vunpack.c.h.b16 %v65
    %v135 = vunpack.c.l.b16 %v66
    %v136 = vunpack.c.h.b16 %v66
    %v137 = vunpack.c.l.b16 %v67
    %v138 = vunpack.c.h.b16 %v67
    %v139 = vunpack.c.l.b16 %v68
    %v140 = vunpack.c.h.b16 %v68
    %v141 = vpack.c.b16 %v95, %v93
    %v142 = vpack.c.b16 %v96, %v94
    %v143 = vpack.c.b16 %v99, %v97
    %v144 = vpack.c.b16 %v100, %v98
    %v145 = vpack.c.b16 %v103, %v101
    %v146 = vpack.c.b16 %v104, %v102
    %v147 = vpack.c.b16 %v107, %v105
    %v148 = vpack.c.b16 %v108, %v106
    %v149 = vpack.c.b16 %v111, %v109
    %v150 = vpack.c.b16 %v112, %v110
    %v151 = vpack.c.b16 %v115, %v113
    %v152 = vpack.c.b16 %v116, %v114
    %v153 = vpack.c.b16 %v119, %v117
    %v154 = vpack.c.b16 %v120, %v118
    %v155 = vpack.c.b16 %v123, %v121
    %v156 = vpack.c.b16 %v124, %v122
    %v157 = vpack.c.b16 %v127, %v125
    %v158 = vpack.c.b16 %v128, %v126
    %v159 = vpack.c.b16 %v131, %v129
    %v160 = vpack.c.b16 %v132, %v130
    %v161 = vpack.c.b16 %v135, %v133
    %v162 = vpack.c.b16 %v136, %v134
    %v163 = vpack.c.b16 %v139, %v137
    %v164 = vpack.c.b16 %v140, %v138
    %vm189 = vcmask 523264
    %v191 = vsel %vm189, %v44, 0
    %193 = vmatprep.subr.bf16.mxu0 %v156
    %194 = vmatpush1.bf16.msra.mxu0 %v155
    %195 = vmatprep.subr.bf16.mxu0 %v154
    %196 = vmatpush1.bf16.msra.mxu0 %v153
    %197 = vmatprep.subr.bf16.mxu0 %v152
    %198 = vmatpush1.bf16.msra.mxu0 %v151
    %199 = vmatprep.subr.bf16.mxu0 %v150
    %200 = vmatpush1.bf16.msra.mxu0 %v149
    %201 = vmatprep.subr.bf16.mxu0 %v148
    %202 = vmatpush1.bf16.msra.mxu0 %v147
    %203 = vmatprep.subr.bf16.mxu0 %v146
    %204 = vmatpush1.bf16.msra.mxu0 %v145
    %205 = vmatprep.subr.bf16.mxu0 %v144
    %206 = vmatpush1.bf16.msra.mxu0 %v143
    %207 = vmatprep.subr.bf16.mxu0 %v142
    %208 = vmatpush1.bf16.msra.mxu0 %v141
    %209 = vmatprep.subr.bf16.mxu0 0
    %210 = vmatpush2.bf16.msra.mxu0 0
    %211 = vmatprep.subr.bf16.mxu0 0
    %212 = vmatpush2.bf16.msra.mxu0 0
    %213 = vmatprep.subr.bf16.mxu0 0
    %214 = vmatpush2.bf16.msra.mxu0 0
    %215 = vmatprep.subr.bf16.mxu0 0
    %216 = vmatpush2.bf16.msra.mxu0 0
    %217 = vmatprep.subr.bf16.mxu0 %v164
    %218 = vmatpush2.bf16.msra.mxu0 %v163
    %219 = vmatprep.subr.bf16.mxu0 %v162
    %220 = vmatpush2.bf16.msra.mxu0 %v161
    %221 = vmatprep.subr.bf16.mxu0 %v160
    %222 = vmatpush2.bf16.msra.mxu0 %v159
    %223 = vmatprep.subr.bf16.mxu0 %v158
    %224 = vmatpush2.bf16.msra.mxu0 %v157
    %225 = vmatprep.mubr.bf16.mxu0 %v191
    %226 = vmatmul.mubr.bf16.gmra.mxu0 %v43
    %v227 = vpop.f32.mrf.mxu0
    %v228 = vadd.f32 0.0, %v227
    %v229 = vpop.f32.mrf.mxu0
    %v230 = vadd.f32 0.0, %v229
    %v231 = vpop.f32.mrf.mxu0
    %v232 = vpop.f32.mrf.mxu0
    %233 = vdwg.mxu0
    %v234 = vmax.f32 %v228, %v230
    %236 = vrot.lane.b32.xlu0 %v234, 64
    %v237 = vpop.permute.xlu0 %236
    %v239 = vmax.f32 %v234, %v237
    %v240 = vld [vmem:[%s6] sm:$0x1]
    %v242 = vlaneseq
    %v243 = vshrl.u32 %v242, 7
    %v244 = vsub.s32 0, %v243
    %v245 = vrot.slane %v240, %v244
    %v247 = vadd.f32 %v239, %v245
    %v248 = vmax.f32 %v247, 0.0
    %v249 = vpack.c.bf16 %v248, %v248
    %v250 = vld [vmem:[%s3] sm:$0xf]
    %v251 = vld [vmem:[%s3 + $0x4] sm:$0xf]
    %v252 = vld [vmem:[%s3 + $0x8] sm:$0xf]
    %v253 = vld [vmem:[%s3 + $0xc] sm:$0xf]
    %v254 = vld [vmem:[%s3 + $0x10] sm:$0xf]
    %v255 = vld [vmem:[%s3 + $0x14] sm:$0xf]
    %v256 = vld [vmem:[%s3 + $0x18] sm:$0xf]
    %v257 = vld [vmem:[%s3 + $0x1c] sm:$0xf]
    %v258 = vld [vmem:[%s7] sm:$0x1]
    %v260 = vlaneseq
    %v261 = vshrl.u32 %v260, 7
    %v262 = vsub.s32 0, %v261
    %v263 = vrot.slane %v258, %v262
    %v273 = vunpack.c.l.b16 %v250
    %v274 = vunpack.c.l.b16 %v251
    %v275 = vunpack.c.l.b16 %v252
    %v276 = vunpack.c.l.b16 %v253
    %v277 = vunpack.c.l.b16 %v254
    %v278 = vunpack.c.l.b16 %v255
    %v279 = vunpack.c.l.b16 %v256
    %v280 = vunpack.c.l.b16 %v257
    %v281 = vpack.c.b16 %v274, %v273
    %v282 = vpack.c.b16 %v276, %v275
    %v283 = vpack.c.b16 %v278, %v277
    %v284 = vpack.c.b16 %v280, %v279
    %v290 = vsel %vm189, %v249, 0
    %292 = vmatprep.subr.bf16.mxu0 0
    %293 = vmatpush1.bf16.msra.mxu0 0
    %294 = vmatprep.subr.bf16.mxu0 0
    %295 = vmatpush1.bf16.msra.mxu0 0
    %296 = vmatprep.subr.bf16.mxu0 0
    %297 = vmatpush1.bf16.msra.mxu0 0
    %298 = vmatprep.subr.bf16.mxu0 0
    %299 = vmatpush1.bf16.msra.mxu0 0
    %300 = vmatprep.subr.bf16.mxu0 0
    %301 = vmatpush1.bf16.msra.mxu0 %v284
    %302 = vmatprep.subr.bf16.mxu0 0
    %303 = vmatpush1.bf16.msra.mxu0 %v283
    %304 = vmatprep.subr.bf16.mxu0 0
    %305 = vmatpush1.bf16.msra.mxu0 %v282
    %306 = vmatprep.subr.bf16.mxu0 0
    %307 = vmatpush1.bf16.msra.mxu0 %v281
    %308 = vmatprep.subr.bf16.mxu0 0
    %309 = vmatpush2.bf16.msra.mxu0 0
    %310 = vmatprep.subr.bf16.mxu0 0
    %311 = vmatpush2.bf16.msra.mxu0 0
    %312 = vmatprep.subr.bf16.mxu0 0
    %313 = vmatpush2.bf16.msra.mxu0 0
    %314 = vmatprep.subr.bf16.mxu0 0
    %315 = vmatpush2.bf16.msra.mxu0 0
    %316 = vmatprep.subr.bf16.mxu0 0
    %317 = vmatpush2.bf16.msra.mxu0 0
    %318 = vmatprep.subr.bf16.mxu0 0
    %319 = vmatpush2.bf16.msra.mxu0 0
    %320 = vmatprep.subr.bf16.mxu0 0
    %321 = vmatpush2.bf16.msra.mxu0 0
    %322 = vmatprep.subr.bf16.mxu0 0
    %323 = vmatpush2.bf16.msra.mxu0 0
    %324 = vmatprep.mubr.bf16.mxu0 0
    %325 = vmatmul.mubr.bf16.gmra.mxu0 %v290
    %v326 = vpop.f32.mrf.mxu0
    %v327 = vadd.f32 %v263, %v326
    %v328 = vpop.f32.mrf.mxu0
    %v329 = vpop.f32.mrf.mxu0
    %v330 = vpop.f32.mrf.mxu0
    %331 = vdwg.mxu0
    %v332 = vmax.f32 %v327, 0.0
    %v333 = vpack.c.bf16 %v332, %v332
    %v334 = vld [vmem:[%s4] sm:$0xf]
    %v335 = vld [vmem:[%s4 + $0x4] sm:$0xf]
    %v336 = vld [vmem:[%s1] sm:$0x3]
    %v337 = vpack.c.bf16 %v336, %v336
    %v338 = vld [vmem:[%s5] sm:$0x7]
    %vm339 = vcmask 39936
    %v341 = vsel %vm339, %v337, 0
    %vm343 = vcmask 1041408
    %vm344 = vcmask 1042432
    %v345 = vsel %vm343, 4294967295, 65535
    %v346 = vsel %vm344, %v345, 0
    %v348 = vand.u32 %v338, %v346
    %350 = vmatprep.subr.bf16.mxu0 0
    %351 = vmatpush1.bf16.msra.mxu0 0
    %352 = vmatprep.subr.bf16.mxu0 0
    %353 = vmatpush1.bf16.msra.mxu0 0
    %354 = vmatprep.subr.bf16.mxu0 0
    %355 = vmatpush1.bf16.msra.mxu0 0
    %356 = vmatprep.subr.bf16.mxu0 0
    %357 = vmatpush1.bf16.msra.mxu0 0
    %358 = vmatprep.subr.bf16.mxu0 0
    %359 = vmatpush1.bf16.msra.mxu0 0
    %360 = vmatprep.subr.bf16.mxu0 0
    %361 = vmatpush1.bf16.msra.mxu0 0
    %362 = vmatprep.subr.bf16.mxu0 0
    %363 = vmatpush1.bf16.msra.mxu0 0
    %364 = vmatprep.subr.bf16.mxu0 0
    %365 = vmatpush1.bf16.msra.mxu0 %v348
    %366 = vmatprep.subr.bf16.mxu0 0
    %367 = vmatpush2.bf16.msra.mxu0 0
    %368 = vmatprep.subr.bf16.mxu0 0
    %369 = vmatpush2.bf16.msra.mxu0 0
    %370 = vmatprep.subr.bf16.mxu0 0
    %371 = vmatpush2.bf16.msra.mxu0 0
    %372 = vmatprep.subr.bf16.mxu0 0
    %373 = vmatpush2.bf16.msra.mxu0 0
    %374 = vmatprep.subr.bf16.mxu0 0
    %375 = vmatpush2.bf16.msra.mxu0 0
    %376 = vmatprep.subr.bf16.mxu0 0
    %377 = vmatpush2.bf16.msra.mxu0 0
    %378 = vmatprep.subr.bf16.mxu0 0
    %379 = vmatpush2.bf16.msra.mxu0 0
    %380 = vmatprep.subr.bf16.mxu0 0
    %381 = vmatpush2.bf16.msra.mxu0 0
    %382 = vmatprep.mubr.bf16.mxu0 0
    %383 = vmatmul.mubr.bf16.gmra.mxu0 %v341
    %v384 = vpop.f32.mrf.mxu0
    %v385 = vadd.f32 0.0, %v384
    %v386 = vpop.f32.mrf.mxu0
    %v387 = vpop.f32.mrf.mxu0
    %v388 = vpop.f32.mrf.mxu0
    %389 = vdwg.mxu0
    %v392 = vunpack.c.l.b16 %v334
    %v393 = vunpack.c.l.b16 %v335
    %v394 = vpack.c.b16 %v393, %v392
    %vm396 = vcmask 130048
    %v398 = vsel %vm396, %v333, 0
    %400 = vmatprep.subr.bf16.mxu0 0
    %401 = vmatpush1.bf16.msra.mxu0 0
    %402 = vmatprep.subr.bf16.mxu0 0
    %403 = vmatpush1.bf16.msra.mxu0 0
    %404 = vmatprep.subr.bf16.mxu0 0
    %405 = vmatpush1.bf16.msra.mxu0 0
    %406 = vmatprep.subr.bf16.mxu0 0
    %407 = vmatpush1.bf16.msra.mxu0 0
    %408 = vmatprep.subr.bf16.mxu0 0
    %409 = vmatpush1.bf16.msra.mxu0 0
    %410 = vmatprep.subr.bf16.mxu0 0
    %411 = vmatpush1.bf16.msra.mxu0 0
    %412 = vmatprep.subr.bf16.mxu0 0
    %413 = vmatpush1.bf16.msra.mxu0 0
    %414 = vmatprep.subr.bf16.mxu0 0
    %415 = vmatpush1.bf16.msra.mxu0 %v394
    %416 = vmatprep.subr.bf16.mxu0 0
    %417 = vmatpush2.bf16.msra.mxu0 0
    %418 = vmatprep.subr.bf16.mxu0 0
    %419 = vmatpush2.bf16.msra.mxu0 0
    %420 = vmatprep.subr.bf16.mxu0 0
    %421 = vmatpush2.bf16.msra.mxu0 0
    %422 = vmatprep.subr.bf16.mxu0 0
    %423 = vmatpush2.bf16.msra.mxu0 0
    %424 = vmatprep.subr.bf16.mxu0 0
    %425 = vmatpush2.bf16.msra.mxu0 0
    %426 = vmatprep.subr.bf16.mxu0 0
    %427 = vmatpush2.bf16.msra.mxu0 0
    %428 = vmatprep.subr.bf16.mxu0 0
    %429 = vmatpush2.bf16.msra.mxu0 0
    %430 = vmatprep.subr.bf16.mxu0 0
    %431 = vmatpush2.bf16.msra.mxu0 0
    %432 = vmatprep.mubr.bf16.mxu0 0
    %433 = vmatmul.mubr.bf16.gmra.mxu0 %v398
    %v434 = vpop.f32.mrf.mxu0
    %v435 = vadd.f32 %v385, %v434
    %v436 = vpop.f32.mrf.mxu0
    %v437 = vpop.f32.mrf.mxu0
    %v438 = vpop.f32.mrf.mxu0
    %439 = vdwg.mxu0
    %440 = vst [vmem:[#allocation2] sm:$0x3] %v435
    // Predicated region
    $region34: #{dqn_forward.1} parent=1 // pred_check
      _
    $region35: #{dqn_forward.1} parent=1 // pred_check_branch
      %442 = sbr.rel (0) target = $region37
    $region36: #{dqn_forward.1} parent=1 // pred_region
      %s444 = ssub.s32 32, 32
      %445 = vsyncadd [#allocation3], %s444
      %s447 = sshll.u32 [#allocation2], 4
      %s448 = int_to_ptr.vmem [resolvable:$true] %s447
      %450 = dma.vmem_to_hbm [thread:$0]  %s448, 32, %s8, [#allocation3]
    $region37: #{dqn_forward.1} parent=1 // pred_fallthru
      _
    // Predicated region
    $region38: #{dqn_forward.1} parent=1 // pred_check
      _
    $region39: #{dqn_forward.1} parent=1 // pred_check_branch
      %452 = sbr.rel (0) target = $region41
    $region40: #{dqn_forward.1} parent=1 // pred_region
      %453 = dma.done [#allocation3], 32
    $region41: #{dqn_forward.1} parent=1 // pred_fallthru
      _
    %454 = vsyncpa [#allocation3], 1

</llo_original>
